<compile_context>
chip_gen: v7x
topology: tpu7x:2x2x1
jax: 0.10.0
libtpu: 0.0.40
codegen_flags: <defaults>
</compile_context>

<pallas_src>
import functools

import jax
import jax.numpy as jnp
from jax.experimental import pallas as pl
from jax.experimental.pallas import tpu as pltpu

F_IN = 15
F_HID = 3
LANES = 128
CHUNK_SUBLANES = 64  # per-chunk working set ~24-32 vregs (of 64)


def mlp_kernel(x_ref, w1_ref, b1_ref, w2_ref, b2_ref, o_ref, *, chunk):
    """One batch tile, feature-major 3-D layout.

    x_ref : (15, TBB, 128) VMEM -- batch on (sublane, lane), full vreg density
    w1_ref: (3, 15) SMEM, b1_ref: (3,) SMEM
    w2_ref: (1, 3)  SMEM, b2_ref: (1,) SMEM
    o_ref : (TBB, 128) VMEM     -- lane-dense output slab
    """
    tbb = o_ref.shape[0]

    # Hoist the 52 tiny weight/bias scalars out of the chunk loop (one SMEM
    # scalar load each for the whole tile).
    w1s = [[w1_ref[j, k] for k in range(F_IN)] for j in range(F_HID)]
    b1s = [b1_ref[j] for j in range(F_HID)]
    w2s = [w2_ref[0, j] for j in range(F_HID)]
    b2s = b2_ref[0]

    # Static chunking over sublanes bounds live vregs; each chunk's
    # intermediates die at its o_ref store.
    for s0 in range(0, tbb, chunk):
        cs = min(chunk, tbb - s0)
        y = None
        for j in range(F_HID):
            # Hidden neuron j: VPU broadcast-FMAs over the 15 input features.
            h = None
            for k in range(F_IN):
                t = w1s[j][k] * x_ref[k, s0:s0 + cs, :]
                h = t if h is None else h + t
            h = jnp.maximum(h + b1s[j], 0.0)       # bias + ReLU
            t = w2s[j] * h                         # Linear(3 -> 1) accumulate
            y = t if y is None else y + t
        y = y + b2s
        # Sigmoid via tanh: EUP slot, finite intermediates, matches jax.nn.sigmoid.
        o_ref[s0:s0 + cs, :] = (0.5 * (jnp.tanh(0.5 * y) + 1.0)).astype(o_ref.dtype)


def ann4_forward(x, w1, b1, w2, b2, *, tb=32768, x_is_feature_major=False):
    """Forward pass of ANN_4.

    x: (B, 15) float32 (or (15, B) if x_is_feature_major=True).
    PyTorch-layout params: w1 (3, 15), b1 (3,), w2 (1, 3), b2 (1,).
    Returns (B, 1) = sigmoid(relu(x @ w1.T + b1) @ w2.T + b2).
    """
    if x_is_feature_major:
        f_in, B = x.shape
        x_t = x
    else:
        B, f_in = x.shape
        # TODO(synk): if the producer can emit feature-major (15, B) activations,
        # call with x_is_feature_major=True and this transpose copy disappears.
        x_t = x.T
    assert f_in == F_IN

    nb = pl.cdiv(B, LANES)            # number of 128-lane batch groups
    b_pad = nb * LANES
    if b_pad != B:                    # pad only to a lane multiple (not to tb)
        x_t = jnp.pad(x_t, ((0, 0), (0, b_pad - B)))
    x3 = x_t.reshape(F_IN, nb, LANES)  # free row-major reshape -> (15, nb, 128)

    # Tile of tbb sublane-groups (tb batch elements). Keep tbb sublane-aligned
    # (multiple of 8) unless a single tile covers the whole batch.
    tbb_req = max(1, tb // LANES)
    if tbb_req >= nb:
        tbb = nb
    else:
        tbb = max(8, (tbb_req // 8) * 8)
        if tbb >= CHUNK_SUBLANES:
            tbb = (tbb // CHUNK_SUBLANES) * CHUNK_SUBLANES
        tbb = min(tbb, nb)
    chunk = min(CHUNK_SUBLANES, tbb)
    grid = (pl.cdiv(nb, tbb),)

    out = pl.pallas_call(
        functools.partial(mlp_kernel, chunk=chunk),
        out_shape=jax.ShapeDtypeStruct((nb, LANES), jnp.float32),
        grid=grid,
        in_specs=[
            # Batch-tiled activations; default double buffering.
            pl.BlockSpec((F_IN, tbb, LANES), lambda i: (0, i, 0)),
            # Tiny weights/biases live in SMEM for the whole grid (scalar reads).
            pl.BlockSpec(memory_space=pltpu.MemorySpace.SMEM),
            pl.BlockSpec(memory_space=pltpu.MemorySpace.SMEM),
            pl.BlockSpec(memory_space=pltpu.MemorySpace.SMEM),
            pl.BlockSpec(memory_space=pltpu.MemorySpace.SMEM),
        ],
        out_specs=pl.BlockSpec((tbb, LANES), lambda i: (i, 0)),
        compiler_params=pltpu.CompilerParams(
            dimension_semantics=("parallel",)),  # shards batch over v7x's 2 TCs
    )(x3, w1, b1, w2, b2)

    # Free reshape + single small slice; no output transpose pass.
    return out.reshape(-1)[:B][:, None]


def init_params(key):
    """nn.Linear-style U(-1/sqrt(fan_in), 1/sqrt(fan_in)) init, PyTorch (out,in) layout."""
    k1, k2, k3, k4 = jax.random.split(key, 4)
    bound1 = 1.0 / (F_IN ** 0.5)
    bound2 = 1.0 / (F_HID ** 0.5)
    w1 = jax.random.uniform(k1, (F_HID, F_IN), jnp.float32, -bound1, bound1)
    b1 = jax.random.uniform(k2, (F_HID,), jnp.float32, -bound1, bound1)
    w2 = jax.random.uniform(k3, (1, F_HID), jnp.float32, -bound2, bound2)
    b2 = jax.random.uniform(k4, (1,), jnp.float32, -bound2, bound2)
    return w1, b1, w2, b2


if __name__ == "__main__":
    key = jax.random.PRNGKey(0)
    kx1, kx2, kp = jax.random.split(key, 3)
    w1, b1, w2, b2 = init_params(kp)

    def ref_forward(x):
        h = jnp.maximum(x @ w1.T + b1, 0.0)
        return jax.nn.sigmoid(h @ w2.T + b2)

    # Case 1: small ragged batch, single tile (default tb).
    B1 = 300
    x1 = jax.random.normal(kx1, (B1, F_IN), jnp.float32)
    out1 = jax.block_until_ready(ann4_forward(x1, w1, b1, w2, b2))
    assert out1.shape == (B1, 1)
    assert jnp.allclose(out1, ref_forward(x1), atol=1e-5, rtol=1e-5)

    # Case 2: multi-step grid with a partial last block (small tile tb=1024).
    B2 = 1200
    x2 = jax.random.normal(kx2, (B2, F_IN), jnp.float32)
    out2 = jax.block_until_ready(ann4_forward(x2, w1, b1, w2, b2, tb=1024))
    assert out2.shape == (B2, 1)
    assert jnp.allclose(out2, ref_forward(x2), atol=1e-5, rtol=1e-5)

    # Case 3: producer already supplies the feature-major layout (skips x.T copy).
    out3 = jax.block_until_ready(
        ann4_forward(x1.T, w1, b1, w2, b2, x_is_feature_major=True))
    assert jnp.allclose(out3, out1, atol=1e-6, rtol=1e-6)

    print("KERNEL_OK")
</pallas_src>

<mosaic_0001>
module attributes {stable_mosaic.version = 11 : i64} {
  func.func @mlp_kernel(%arg0: i32, %arg1: memref<15x3x128xf32, #tpu.memory_space<vmem>>, %arg2: memref<3x15xf32, #tpu.memory_space<smem>>, %arg3: memref<3xf32, #tpu.memory_space<smem>>, %arg4: memref<1x3xf32, #tpu.memory_space<smem>>, %arg5: memref<1xf32, #tpu.memory_space<smem>>, %arg6: memref<3x128xf32, #tpu.memory_space<vmem>>) attributes {dimension_semantics = [#tpu.dimension_semantics<parallel>], iteration_bounds = array<i64: 1>, scalar_prefetch = 0 : i64, scratch_operands = 0 : i64, tpu.core_type = #tpu.core_type<tc>, window_params = [{transform_indices = @transform_0, window_bounds = array<i64: 15, 3, 128>}, {transform_indices = @transform_1, window_bounds = array<i64: 3, 15>}, {transform_indices = @transform_2, window_bounds = array<i64: 3>}, {transform_indices = @transform_3, window_bounds = array<i64: 1, 3>}, {transform_indices = @transform_4, window_bounds = array<i64: 1>}, {transform_indices = @transform_5, window_bounds = array<i64: 3, 128>}]} {
    %c0 = arith.constant 0 : index
    %c0_0 = arith.constant 0 : index
    %0 = memref.load %arg2[%c0, %c0_0] : memref<3x15xf32, #tpu.memory_space<smem>>
    %c0_1 = arith.constant 0 : index
    %c1 = arith.constant 1 : index
    %1 = memref.load %arg2[%c0_1, %c1] : memref<3x15xf32, #tpu.memory_space<smem>>
    %c0_2 = arith.constant 0 : index
    %c2 = arith.constant 2 : index
    %2 = memref.load %arg2[%c0_2, %c2] : memref<3x15xf32, #tpu.memory_space<smem>>
    %c0_3 = arith.constant 0 : index
    %c3 = arith.constant 3 : index
    %3 = memref.load %arg2[%c0_3, %c3] : memref<3x15xf32, #tpu.memory_space<smem>>
    %c0_4 = arith.constant 0 : index
    %c4 = arith.constant 4 : index
    %4 = memref.load %arg2[%c0_4, %c4] : memref<3x15xf32, #tpu.memory_space<smem>>
    %c0_5 = arith.constant 0 : index
    %c5 = arith.constant 5 : index
    %5 = memref.load %arg2[%c0_5, %c5] : memref<3x15xf32, #tpu.memory_space<smem>>
    %c0_6 = arith.constant 0 : index
    %c6 = arith.constant 6 : index
    %6 = memref.load %arg2[%c0_6, %c6] : memref<3x15xf32, #tpu.memory_space<smem>>
    %c0_7 = arith.constant 0 : index
    %c7 = arith.constant 7 : index
    %7 = memref.load %arg2[%c0_7, %c7] : memref<3x15xf32, #tpu.memory_space<smem>>
    %c0_8 = arith.constant 0 : index
    %c8 = arith.constant 8 : index
    %8 = memref.load %arg2[%c0_8, %c8] : memref<3x15xf32, #tpu.memory_space<smem>>
    %c0_9 = arith.constant 0 : index
    %c9 = arith.constant 9 : index
    %9 = memref.load %arg2[%c0_9, %c9] : memref<3x15xf32, #tpu.memory_space<smem>>
    %c0_10 = arith.constant 0 : index
    %c10 = arith.constant 10 : index
    %10 = memref.load %arg2[%c0_10, %c10] : memref<3x15xf32, #tpu.memory_space<smem>>
    %c0_11 = arith.constant 0 : index
    %c11 = arith.constant 11 : index
    %11 = memref.load %arg2[%c0_11, %c11] : memref<3x15xf32, #tpu.memory_space<smem>>
    %c0_12 = arith.constant 0 : index
    %c12 = arith.constant 12 : index
    %12 = memref.load %arg2[%c0_12, %c12] : memref<3x15xf32, #tpu.memory_space<smem>>
    %c0_13 = arith.constant 0 : index
    %c13 = arith.constant 13 : index
    %13 = memref.load %arg2[%c0_13, %c13] : memref<3x15xf32, #tpu.memory_space<smem>>
    %c0_14 = arith.constant 0 : index
    %c14 = arith.constant 14 : index
    %14 = memref.load %arg2[%c0_14, %c14] : memref<3x15xf32, #tpu.memory_space<smem>>
    %c1_15 = arith.constant 1 : index
    %c0_16 = arith.constant 0 : index
    %15 = memref.load %arg2[%c1_15, %c0_16] : memref<3x15xf32, #tpu.memory_space<smem>>
    %c1_17 = arith.constant 1 : index
    %c1_18 = arith.constant 1 : index
    %16 = memref.load %arg2[%c1_17, %c1_18] : memref<3x15xf32, #tpu.memory_space<smem>>
    %c1_19 = arith.constant 1 : index
    %c2_20 = arith.constant 2 : index
    %17 = memref.load %arg2[%c1_19, %c2_20] : memref<3x15xf32, #tpu.memory_space<smem>>
    %c1_21 = arith.constant 1 : index
    %c3_22 = arith.constant 3 : index
    %18 = memref.load %arg2[%c1_21, %c3_22] : memref<3x15xf32, #tpu.memory_space<smem>>
    %c1_23 = arith.constant 1 : index
    %c4_24 = arith.constant 4 : index
    %19 = memref.load %arg2[%c1_23, %c4_24] : memref<3x15xf32, #tpu.memory_space<smem>>
    %c1_25 = arith.constant 1 : index
    %c5_26 = arith.constant 5 : index
    %20 = memref.load %arg2[%c1_25, %c5_26] : memref<3x15xf32, #tpu.memory_space<smem>>
    %c1_27 = arith.constant 1 : index
    %c6_28 = arith.constant 6 : index
    %21 = memref.load %arg2[%c1_27, %c6_28] : memref<3x15xf32, #tpu.memory_space<smem>>
    %c1_29 = arith.constant 1 : index
    %c7_30 = arith.constant 7 : index
    %22 = memref.load %arg2[%c1_29, %c7_30] : memref<3x15xf32, #tpu.memory_space<smem>>
    %c1_31 = arith.constant 1 : index
    %c8_32 = arith.constant 8 : index
    %23 = memref.load %arg2[%c1_31, %c8_32] : memref<3x15xf32, #tpu.memory_space<smem>>
    %c1_33 = arith.constant 1 : index
    %c9_34 = arith.constant 9 : index
    %24 = memref.load %arg2[%c1_33, %c9_34] : memref<3x15xf32, #tpu.memory_space<smem>>
    %c1_35 = arith.constant 1 : index
    %c10_36 = arith.constant 10 : index
    %25 = memref.load %arg2[%c1_35, %c10_36] : memref<3x15xf32, #tpu.memory_space<smem>>
    %c1_37 = arith.constant 1 : index
    %c11_38 = arith.constant 11 : index
    %26 = memref.load %arg2[%c1_37, %c11_38] : memref<3x15xf32, #tpu.memory_space<smem>>
    %c1_39 = arith.constant 1 : index
    %c12_40 = arith.constant 12 : index
    %27 = memref.load %arg2[%c1_39, %c12_40] : memref<3x15xf32, #tpu.memory_space<smem>>
    %c1_41 = arith.constant 1 : index
    %c13_42 = arith.constant 13 : index
    %28 = memref.load %arg2[%c1_41, %c13_42] : memref<3x15xf32, #tpu.memory_space<smem>>
    %c1_43 = arith.constant 1 : index
    %c14_44 = arith.constant 14 : index
    %29 = memref.load %arg2[%c1_43, %c14_44] : memref<3x15xf32, #tpu.memory_space<smem>>
    %c2_45 = arith.constant 2 : index
    %c0_46 = arith.constant 0 : index
    %30 = memref.load %arg2[%c2_45, %c0_46] : memref<3x15xf32, #tpu.memory_space<smem>>
    %c2_47 = arith.constant 2 : index
    %c1_48 = arith.constant 1 : index
    %31 = memref.load %arg2[%c2_47, %c1_48] : memref<3x15xf32, #tpu.memory_space<smem>>
    %c2_49 = arith.constant 2 : index
    %c2_50 = arith.constant 2 : index
    %32 = memref.load %arg2[%c2_49, %c2_50] : memref<3x15xf32, #tpu.memory_space<smem>>
    %c2_51 = arith.constant 2 : index
    %c3_52 = arith.constant 3 : index
    %33 = memref.load %arg2[%c2_51, %c3_52] : memref<3x15xf32, #tpu.memory_space<smem>>
    %c2_53 = arith.constant 2 : index
    %c4_54 = arith.constant 4 : index
    %34 = memref.load %arg2[%c2_53, %c4_54] : memref<3x15xf32, #tpu.memory_space<smem>>
    %c2_55 = arith.constant 2 : index
    %c5_56 = arith.constant 5 : index
    %35 = memref.load %arg2[%c2_55, %c5_56] : memref<3x15xf32, #tpu.memory_space<smem>>
    %c2_57 = arith.constant 2 : index
    %c6_58 = arith.constant 6 : index
    %36 = memref.load %arg2[%c2_57, %c6_58] : memref<3x15xf32, #tpu.memory_space<smem>>
    %c2_59 = arith.constant 2 : index
    %c7_60 = arith.constant 7 : index
    %37 = memref.load %arg2[%c2_59, %c7_60] : memref<3x15xf32, #tpu.memory_space<smem>>
    %c2_61 = arith.constant 2 : index
    %c8_62 = arith.constant 8 : index
    %38 = memref.load %arg2[%c2_61, %c8_62] : memref<3x15xf32, #tpu.memory_space<smem>>
    %c2_63 = arith.constant 2 : index
    %c9_64 = arith.constant 9 : index
    %39 = memref.load %arg2[%c2_63, %c9_64] : memref<3x15xf32, #tpu.memory_space<smem>>
    %c2_65 = arith.constant 2 : index
    %c10_66 = arith.constant 10 : index
    %40 = memref.load %arg2[%c2_65, %c10_66] : memref<3x15xf32, #tpu.memory_space<smem>>
    %c2_67 = arith.constant 2 : index
    %c11_68 = arith.constant 11 : index
    %41 = memref.load %arg2[%c2_67, %c11_68] : memref<3x15xf32, #tpu.memory_space<smem>>
    %c2_69 = arith.constant 2 : index
    %c12_70 = arith.constant 12 : index
    %42 = memref.load %arg2[%c2_69, %c12_70] : memref<3x15xf32, #tpu.memory_space<smem>>
    %c2_71 = arith.constant 2 : index
    %c13_72 = arith.constant 13 : index
    %43 = memref.load %arg2[%c2_71, %c13_72] : memref<3x15xf32, #tpu.memory_space<smem>>
    %c2_73 = arith.constant 2 : index
    %c14_74 = arith.constant 14 : index
    %44 = memref.load %arg2[%c2_73, %c14_74] : memref<3x15xf32, #tpu.memory_space<smem>>
    %c0_75 = arith.constant 0 : index
    %45 = memref.load %arg3[%c0_75] : memref<3xf32, #tpu.memory_space<smem>>
    %c1_76 = arith.constant 1 : index
    %46 = memref.load %arg3[%c1_76] : memref<3xf32, #tpu.memory_space<smem>>
    %c2_77 = arith.constant 2 : index
    %47 = memref.load %arg3[%c2_77] : memref<3xf32, #tpu.memory_space<smem>>
    %c0_78 = arith.constant 0 : index
    %c0_79 = arith.constant 0 : index
    %48 = memref.load %arg4[%c0_78, %c0_79] : memref<1x3xf32, #tpu.memory_space<smem>>
    %c0_80 = arith.constant 0 : index
    %c1_81 = arith.constant 1 : index
    %49 = memref.load %arg4[%c0_80, %c1_81] : memref<1x3xf32, #tpu.memory_space<smem>>
    %c0_82 = arith.constant 0 : index
    %c2_83 = arith.constant 2 : index
    %50 = memref.load %arg4[%c0_82, %c2_83] : memref<1x3xf32, #tpu.memory_space<smem>>
    %c0_84 = arith.constant 0 : index
    %51 = memref.load %arg5[%c0_84] : memref<1xf32, #tpu.memory_space<smem>>
    %c0_85 = arith.constant 0 : index
    %c0_86 = arith.constant 0 : index
    %c0_87 = arith.constant 0 : index
    %52 = vector.load %arg1[%c0_85, %c0_86, %c0_87] : memref<15x3x128xf32, #tpu.memory_space<vmem>>, vector<1x3x128xf32>
    %53 = vector.shape_cast %52 : vector<1x3x128xf32> to vector<3x128xf32>
    %54 = vector.broadcast %0 : f32 to vector<3x128xf32>
    %55 = arith.mulf %54, %53 : vector<3x128xf32>
    %c1_88 = arith.constant 1 : index
    %c0_89 = arith.constant 0 : index
    %c0_90 = arith.constant 0 : index
    %56 = vector.load %arg1[%c1_88, %c0_89, %c0_90] : memref<15x3x128xf32, #tpu.memory_space<vmem>>, vector<1x3x128xf32>
    %57 = vector.shape_cast %56 : vector<1x3x128xf32> to vector<3x128xf32>
    %58 = vector.broadcast %1 : f32 to vector<3x128xf32>
    %59 = arith.mulf %58, %57 : vector<3x128xf32>
    %60 = arith.addf %55, %59 : vector<3x128xf32>
    %c2_91 = arith.constant 2 : index
    %c0_92 = arith.constant 0 : index
    %c0_93 = arith.constant 0 : index
    %61 = vector.load %arg1[%c2_91, %c0_92, %c0_93] : memref<15x3x128xf32, #tpu.memory_space<vmem>>, vector<1x3x128xf32>
    %62 = vector.shape_cast %61 : vector<1x3x128xf32> to vector<3x128xf32>
    %63 = vector.broadcast %2 : f32 to vector<3x128xf32>
    %64 = arith.mulf %63, %62 : vector<3x128xf32>
    %65 = arith.addf %60, %64 : vector<3x128xf32>
    %c3_94 = arith.constant 3 : index
    %c0_95 = arith.constant 0 : index
    %c0_96 = arith.constant 0 : index
    %66 = vector.load %arg1[%c3_94, %c0_95, %c0_96] : memref<15x3x128xf32, #tpu.memory_space<vmem>>, vector<1x3x128xf32>
    %67 = vector.shape_cast %66 : vector<1x3x128xf32> to vector<3x128xf32>
    %68 = vector.broadcast %3 : f32 to vector<3x128xf32>
    %69 = arith.mulf %68, %67 : vector<3x128xf32>
    %70 = arith.addf %65, %69 : vector<3x128xf32>
    %c4_97 = arith.constant 4 : index
    %c0_98 = arith.constant 0 : index
    %c0_99 = arith.constant 0 : index
    %71 = vector.load %arg1[%c4_97, %c0_98, %c0_99] : memref<15x3x128xf32, #tpu.memory_space<vmem>>, vector<1x3x128xf32>
    %72 = vector.shape_cast %71 : vector<1x3x128xf32> to vector<3x128xf32>
    %73 = vector.broadcast %4 : f32 to vector<3x128xf32>
    %74 = arith.mulf %73, %72 : vector<3x128xf32>
    %75 = arith.addf %70, %74 : vector<3x128xf32>
    %c5_100 = arith.constant 5 : index
    %c0_101 = arith.constant 0 : index
    %c0_102 = arith.constant 0 : index
    %76 = vector.load %arg1[%c5_100, %c0_101, %c0_102] : memref<15x3x128xf32, #tpu.memory_space<vmem>>, vector<1x3x128xf32>
    %77 = vector.shape_cast %76 : vector<1x3x128xf32> to vector<3x128xf32>
    %78 = vector.broadcast %5 : f32 to vector<3x128xf32>
    %79 = arith.mulf %78, %77 : vector<3x128xf32>
    %80 = arith.addf %75, %79 : vector<3x128xf32>
    %c6_103 = arith.constant 6 : index
    %c0_104 = arith.constant 0 : index
    %c0_105 = arith.constant 0 : index
    %81 = vector.load %arg1[%c6_103, %c0_104, %c0_105] : memref<15x3x128xf32, #tpu.memory_space<vmem>>, vector<1x3x128xf32>
    %82 = vector.shape_cast %81 : vector<1x3x128xf32> to vector<3x128xf32>
    %83 = vector.broadcast %6 : f32 to vector<3x128xf32>
    %84 = arith.mulf %83, %82 : vector<3x128xf32>
    %85 = arith.addf %80, %84 : vector<3x128xf32>
    %c7_106 = arith.constant 7 : index
    %c0_107 = arith.constant 0 : index
    %c0_108 = arith.constant 0 : index
    %86 = vector.load %arg1[%c7_106, %c0_107, %c0_108] : memref<15x3x128xf32, #tpu.memory_space<vmem>>, vector<1x3x128xf32>
    %87 = vector.shape_cast %86 : vector<1x3x128xf32> to vector<3x128xf32>
    %88 = vector.broadcast %7 : f32 to vector<3x128xf32>
    %89 = arith.mulf %88, %87 : vector<3x128xf32>
    %90 = arith.addf %85, %89 : vector<3x128xf32>
    %c8_109 = arith.constant 8 : index
    %c0_110 = arith.constant 0 : index
    %c0_111 = arith.constant 0 : index
    %91 = vector.load %arg1[%c8_109, %c0_110, %c0_111] : memref<15x3x128xf32, #tpu.memory_space<vmem>>, vector<1x3x128xf32>
    %92 = vector.shape_cast %91 : vector<1x3x128xf32> to vector<3x128xf32>
    %93 = vector.broadcast %8 : f32 to vector<3x128xf32>
    %94 = arith.mulf %93, %92 : vector<3x128xf32>
    %95 = arith.addf %90, %94 : vector<3x128xf32>
    %c9_112 = arith.constant 9 : index
    %c0_113 = arith.constant 0 : index
    %c0_114 = arith.constant 0 : index
    %96 = vector.load %arg1[%c9_112, %c0_113, %c0_114] : memref<15x3x128xf32, #tpu.memory_space<vmem>>, vector<1x3x128xf32>
    %97 = vector.shape_cast %96 : vector<1x3x128xf32> to vector<3x128xf32>
    %98 = vector.broadcast %9 : f32 to vector<3x128xf32>
    %99 = arith.mulf %98, %97 : vector<3x128xf32>
    %100 = arith.addf %95, %99 : vector<3x128xf32>
    %c10_115 = arith.constant 10 : index
    %c0_116 = arith.constant 0 : index
    %c0_117 = arith.constant 0 : index
    %101 = vector.load %arg1[%c10_115, %c0_116, %c0_117] : memref<15x3x128xf32, #tpu.memory_space<vmem>>, vector<1x3x128xf32>
    %102 = vector.shape_cast %101 : vector<1x3x128xf32> to vector<3x128xf32>
    %103 = vector.broadcast %10 : f32 to vector<3x128xf32>
    %104 = arith.mulf %103, %102 : vector<3x128xf32>
    %105 = arith.addf %100, %104 : vector<3x128xf32>
    %c11_118 = arith.constant 11 : index
    %c0_119 = arith.constant 0 : index
    %c0_120 = arith.constant 0 : index
    %106 = vector.load %arg1[%c11_118, %c0_119, %c0_120] : memref<15x3x128xf32, #tpu.memory_space<vmem>>, vector<1x3x128xf32>
    %107 = vector.shape_cast %106 : vector<1x3x128xf32> to vector<3x128xf32>
    %108 = vector.broadcast %11 : f32 to vector<3x128xf32>
    %109 = arith.mulf %108, %107 : vector<3x128xf32>
    %110 = arith.addf %105, %109 : vector<3x128xf32>
    %c12_121 = arith.constant 12 : index
    %c0_122 = arith.constant 0 : index
    %c0_123 = arith.constant 0 : index
    %111 = vector.load %arg1[%c12_121, %c0_122, %c0_123] : memref<15x3x128xf32, #tpu.memory_space<vmem>>, vector<1x3x128xf32>
    %112 = vector.shape_cast %111 : vector<1x3x128xf32> to vector<3x128xf32>
    %113 = vector.broadcast %12 : f32 to vector<3x128xf32>
    %114 = arith.mulf %113, %112 : vector<3x128xf32>
    %115 = arith.addf %110, %114 : vector<3x128xf32>
    %c13_124 = arith.constant 13 : index
    %c0_125 = arith.constant 0 : index
    %c0_126 = arith.constant 0 : index
    %116 = vector.load %arg1[%c13_124, %c0_125, %c0_126] : memref<15x3x128xf32, #tpu.memory_space<vmem>>, vector<1x3x128xf32>
    %117 = vector.shape_cast %116 : vector<1x3x128xf32> to vector<3x128xf32>
    %118 = vector.broadcast %13 : f32 to vector<3x128xf32>
    %119 = arith.mulf %118, %117 : vector<3x128xf32>
    %120 = arith.addf %115, %119 : vector<3x128xf32>
    %c14_127 = arith.constant 14 : index
    %c0_128 = arith.constant 0 : index
    %c0_129 = arith.constant 0 : index
    %121 = vector.load %arg1[%c14_127, %c0_128, %c0_129] : memref<15x3x128xf32, #tpu.memory_space<vmem>>, vector<1x3x128xf32>
    %122 = vector.shape_cast %121 : vector<1x3x128xf32> to vector<3x128xf32>
    %123 = vector.broadcast %14 : f32 to vector<3x128xf32>
    %124 = arith.mulf %123, %122 : vector<3x128xf32>
    %125 = arith.addf %120, %124 : vector<3x128xf32>
    %126 = vector.broadcast %45 : f32 to vector<3x128xf32>
    %127 = arith.addf %125, %126 : vector<3x128xf32>
    %cst = arith.constant 0.000000e+00 : f32
    %128 = vector.broadcast %cst : f32 to vector<3x128xf32>
    %129 = arith.maximumf %127, %128 : vector<3x128xf32>
    %130 = vector.broadcast %48 : f32 to vector<3x128xf32>
    %131 = arith.mulf %130, %129 : vector<3x128xf32>
    %c0_130 = arith.constant 0 : index
    %c0_131 = arith.constant 0 : index
    %c0_132 = arith.constant 0 : index
    %132 = vector.load %arg1[%c0_130, %c0_131, %c0_132] : memref<15x3x128xf32, #tpu.memory_space<vmem>>, vector<1x3x128xf32>
    %133 = vector.shape_cast %132 : vector<1x3x128xf32> to vector<3x128xf32>
    %134 = vector.broadcast %15 : f32 to vector<3x128xf32>
    %135 = arith.mulf %134, %133 : vector<3x128xf32>
    %c1_133 = arith.constant 1 : index
    %c0_134 = arith.constant 0 : index
    %c0_135 = arith.constant 0 : index
    %136 = vector.load %arg1[%c1_133, %c0_134, %c0_135] : memref<15x3x128xf32, #tpu.memory_space<vmem>>, vector<1x3x128xf32>
    %137 = vector.shape_cast %136 : vector<1x3x128xf32> to vector<3x128xf32>
    %138 = vector.broadcast %16 : f32 to vector<3x128xf32>
    %139 = arith.mulf %138, %137 : vector<3x128xf32>
    %140 = arith.addf %135, %139 : vector<3x128xf32>
    %c2_136 = arith.constant 2 : index
    %c0_137 = arith.constant 0 : index
    %c0_138 = arith.constant 0 : index
    %141 = vector.load %arg1[%c2_136, %c0_137, %c0_138] : memref<15x3x128xf32, #tpu.memory_space<vmem>>, vector<1x3x128xf32>
    %142 = vector.shape_cast %141 : vector<1x3x128xf32> to vector<3x128xf32>
    %143 = vector.broadcast %17 : f32 to vector<3x128xf32>
    %144 = arith.mulf %143, %142 : vector<3x128xf32>
    %145 = arith.addf %140, %144 : vector<3x128xf32>
    %c3_139 = arith.constant 3 : index
    %c0_140 = arith.constant 0 : index
    %c0_141 = arith.constant 0 : index
    %146 = vector.load %arg1[%c3_139, %c0_140, %c0_141] : memref<15x3x128xf32, #tpu.memory_space<vmem>>, vector<1x3x128xf32>
    %147 = vector.shape_cast %146 : vector<1x3x128xf32> to vector<3x128xf32>
    %148 = vector.broadcast %18 : f32 to vector<3x128xf32>
    %149 = arith.mulf %148, %147 : vector<3x128xf32>
    %150 = arith.addf %145, %149 : vector<3x128xf32>
    %c4_142 = arith.constant 4 : index
    %c0_143 = arith.constant 0 : index
    %c0_144 = arith.constant 0 : index
    %151 = vector.load %arg1[%c4_142, %c0_143, %c0_144] : memref<15x3x128xf32, #tpu.memory_space<vmem>>, vector<1x3x128xf32>
    %152 = vector.shape_cast %151 : vector<1x3x128xf32> to vector<3x128xf32>
    %153 = vector.broadcast %19 : f32 to vector<3x128xf32>
    %154 = arith.mulf %153, %152 : vector<3x128xf32>
    %155 = arith.addf %150, %154 : vector<3x128xf32>
    %c5_145 = arith.constant 5 : index
    %c0_146 = arith.constant 0 : index
    %c0_147 = arith.constant 0 : index
    %156 = vector.load %arg1[%c5_145, %c0_146, %c0_147] : memref<15x3x128xf32, #tpu.memory_space<vmem>>, vector<1x3x128xf32>
    %157 = vector.shape_cast %156 : vector<1x3x128xf32> to vector<3x128xf32>
    %158 = vector.broadcast %20 : f32 to vector<3x128xf32>
    %159 = arith.mulf %158, %157 : vector<3x128xf32>
    %160 = arith.addf %155, %159 : vector<3x128xf32>
    %c6_148 = arith.constant 6 : index
    %c0_149 = arith.constant 0 : index
    %c0_150 = arith.constant 0 : index
    %161 = vector.load %arg1[%c6_148, %c0_149, %c0_150] : memref<15x3x128xf32, #tpu.memory_space<vmem>>, vector<1x3x128xf32>
    %162 = vector.shape_cast %161 : vector<1x3x128xf32> to vector<3x128xf32>
    %163 = vector.broadcast %21 : f32 to vector<3x128xf32>
    %164 = arith.mulf %163, %162 : vector<3x128xf32>
    %165 = arith.addf %160, %164 : vector<3x128xf32>
    %c7_151 = arith.constant 7 : index
    %c0_152 = arith.constant 0 : index
    %c0_153 = arith.constant 0 : index
    %166 = vector.load %arg1[%c7_151, %c0_152, %c0_153] : memref<15x3x128xf32, #tpu.memory_space<vmem>>, vector<1x3x128xf32>
    %167 = vector.shape_cast %166 : vector<1x3x128xf32> to vector<3x128xf32>
    %168 = vector.broadcast %22 : f32 to vector<3x128xf32>
    %169 = arith.mulf %168, %167 : vector<3x128xf32>
    %170 = arith.addf %165, %169 : vector<3x128xf32>
    %c8_154 = arith.constant 8 : index
    %c0_155 = arith.constant 0 : index
    %c0_156 = arith.constant 0 : index
    %171 = vector.load %arg1[%c8_154, %c0_155, %c0_156] : memref<15x3x128xf32, #tpu.memory_space<vmem>>, vector<1x3x128xf32>
    %172 = vector.shape_cast %171 : vector<1x3x128xf32> to vector<3x128xf32>
    %173 = vector.broadcast %23 : f32 to vector<3x128xf32>
    %174 = arith.mulf %173, %172 : vector<3x128xf32>
    %175 = arith.addf %170, %174 : vector<3x128xf32>
    %c9_157 = arith.constant 9 : index
    %c0_158 = arith.constant 0 : index
    %c0_159 = arith.constant 0 : index
    %176 = vector.load %arg1[%c9_157, %c0_158, %c0_159] : memref<15x3x128xf32, #tpu.memory_space<vmem>>, vector<1x3x128xf32>
    %177 = vector.shape_cast %176 : vector<1x3x128xf32> to vector<3x128xf32>
    %178 = vector.broadcast %24 : f32 to vector<3x128xf32>
    %179 = arith.mulf %178, %177 : vector<3x128xf32>
    %180 = arith.addf %175, %179 : vector<3x128xf32>
    %c10_160 = arith.constant 10 : index
    %c0_161 = arith.constant 0 : index
    %c0_162 = arith.constant 0 : index
    %181 = vector.load %arg1[%c10_160, %c0_161, %c0_162] : memref<15x3x128xf32, #tpu.memory_space<vmem>>, vector<1x3x128xf32>
    %182 = vector.shape_cast %181 : vector<1x3x128xf32> to vector<3x128xf32>
    %183 = vector.broadcast %25 : f32 to vector<3x128xf32>
    %184 = arith.mulf %183, %182 : vector<3x128xf32>
    %185 = arith.addf %180, %184 : vector<3x128xf32>
    %c11_163 = arith.constant 11 : index
    %c0_164 = arith.constant 0 : index
    %c0_165 = arith.constant 0 : index
    %186 = vector.load %arg1[%c11_163, %c0_164, %c0_165] : memref<15x3x128xf32, #tpu.memory_space<vmem>>, vector<1x3x128xf32>
    %187 = vector.shape_cast %186 : vector<1x3x128xf32> to vector<3x128xf32>
    %188 = vector.broadcast %26 : f32 to vector<3x128xf32>
    %189 = arith.mulf %188, %187 : vector<3x128xf32>
    %190 = arith.addf %185, %189 : vector<3x128xf32>
    %c12_166 = arith.constant 12 : index
    %c0_167 = arith.constant 0 : index
    %c0_168 = arith.constant 0 : index
    %191 = vector.load %arg1[%c12_166, %c0_167, %c0_168] : memref<15x3x128xf32, #tpu.memory_space<vmem>>, vector<1x3x128xf32>
    %192 = vector.shape_cast %191 : vector<1x3x128xf32> to vector<3x128xf32>
    %193 = vector.broadcast %27 : f32 to vector<3x128xf32>
    %194 = arith.mulf %193, %192 : vector<3x128xf32>
    %195 = arith.addf %190, %194 : vector<3x128xf32>
    %c13_169 = arith.constant 13 : index
    %c0_170 = arith.constant 0 : index
    %c0_171 = arith.constant 0 : index
    %196 = vector.load %arg1[%c13_169, %c0_170, %c0_171] : memref<15x3x128xf32, #tpu.memory_space<vmem>>, vector<1x3x128xf32>
    %197 = vector.shape_cast %196 : vector<1x3x128xf32> to vector<3x128xf32>
    %198 = vector.broadcast %28 : f32 to vector<3x128xf32>
    %199 = arith.mulf %198, %197 : vector<3x128xf32>
    %200 = arith.addf %195, %199 : vector<3x128xf32>
    %c14_172 = arith.constant 14 : index
    %c0_173 = arith.constant 0 : index
    %c0_174 = arith.constant 0 : index
    %201 = vector.load %arg1[%c14_172, %c0_173, %c0_174] : memref<15x3x128xf32, #tpu.memory_space<vmem>>, vector<1x3x128xf32>
    %202 = vector.shape_cast %201 : vector<1x3x128xf32> to vector<3x128xf32>
    %203 = vector.broadcast %29 : f32 to vector<3x128xf32>
    %204 = arith.mulf %203, %202 : vector<3x128xf32>
    %205 = arith.addf %200, %204 : vector<3x128xf32>
    %206 = vector.broadcast %46 : f32 to vector<3x128xf32>
    %207 = arith.addf %205, %206 : vector<3x128xf32>
    %cst_175 = arith.constant 0.000000e+00 : f32
    %208 = vector.broadcast %cst_175 : f32 to vector<3x128xf32>
    %209 = arith.maximumf %207, %208 : vector<3x128xf32>
    %210 = vector.broadcast %49 : f32 to vector<3x128xf32>
    %211 = arith.mulf %210, %209 : vector<3x128xf32>
    %212 = arith.addf %131, %211 : vector<3x128xf32>
    %c0_176 = arith.constant 0 : index
    %c0_177 = arith.constant 0 : index
    %c0_178 = arith.constant 0 : index
    %213 = vector.load %arg1[%c0_176, %c0_177, %c0_178] : memref<15x3x128xf32, #tpu.memory_space<vmem>>, vector<1x3x128xf32>
    %214 = vector.shape_cast %213 : vector<1x3x128xf32> to vector<3x128xf32>
    %215 = vector.broadcast %30 : f32 to vector<3x128xf32>
    %216 = arith.mulf %215, %214 : vector<3x128xf32>
    %c1_179 = arith.constant 1 : index
    %c0_180 = arith.constant 0 : index
    %c0_181 = arith.constant 0 : index
    %217 = vector.load %arg1[%c1_179, %c0_180, %c0_181] : memref<15x3x128xf32, #tpu.memory_space<vmem>>, vector<1x3x128xf32>
    %218 = vector.shape_cast %217 : vector<1x3x128xf32> to vector<3x128xf32>
    %219 = vector.broadcast %31 : f32 to vector<3x128xf32>
    %220 = arith.mulf %219, %218 : vector<3x128xf32>
    %221 = arith.addf %216, %220 : vector<3x128xf32>
    %c2_182 = arith.constant 2 : index
    %c0_183 = arith.constant 0 : index
    %c0_184 = arith.constant 0 : index
    %222 = vector.load %arg1[%c2_182, %c0_183, %c0_184] : memref<15x3x128xf32, #tpu.memory_space<vmem>>, vector<1x3x128xf32>
    %223 = vector.shape_cast %222 : vector<1x3x128xf32> to vector<3x128xf32>
    %224 = vector.broadcast %32 : f32 to vector<3x128xf32>
    %225 = arith.mulf %224, %223 : vector<3x128xf32>
    %226 = arith.addf %221, %225 : vector<3x128xf32>
    %c3_185 = arith.constant 3 : index
    %c0_186 = arith.constant 0 : index
    %c0_187 = arith.constant 0 : index
    %227 = vector.load %arg1[%c3_185, %c0_186, %c0_187] : memref<15x3x128xf32, #tpu.memory_space<vmem>>, vector<1x3x128xf32>
    %228 = vector.shape_cast %227 : vector<1x3x128xf32> to vector<3x128xf32>
    %229 = vector.broadcast %33 : f32 to vector<3x128xf32>
    %230 = arith.mulf %229, %228 : vector<3x128xf32>
    %231 = arith.addf %226, %230 : vector<3x128xf32>
    %c4_188 = arith.constant 4 : index
    %c0_189 = arith.constant 0 : index
    %c0_190 = arith.constant 0 : index
    %232 = vector.load %arg1[%c4_188, %c0_189, %c0_190] : memref<15x3x128xf32, #tpu.memory_space<vmem>>, vector<1x3x128xf32>
    %233 = vector.shape_cast %232 : vector<1x3x128xf32> to vector<3x128xf32>
    %234 = vector.broadcast %34 : f32 to vector<3x128xf32>
    %235 = arith.mulf %234, %233 : vector<3x128xf32>
    %236 = arith.addf %231, %235 : vector<3x128xf32>
    %c5_191 = arith.constant 5 : index
    %c0_192 = arith.constant 0 : index
    %c0_193 = arith.constant 0 : index
    %237 = vector.load %arg1[%c5_191, %c0_192, %c0_193] : memref<15x3x128xf32, #tpu.memory_space<vmem>>, vector<1x3x128xf32>
    %238 = vector.shape_cast %237 : vector<1x3x128xf32> to vector<3x128xf32>
    %239 = vector.broadcast %35 : f32 to vector<3x128xf32>
    %240 = arith.mulf %239, %238 : vector<3x128xf32>
    %241 = arith.addf %236, %240 : vector<3x128xf32>
    %c6_194 = arith.constant 6 : index
    %c0_195 = arith.constant 0 : index
    %c0_196 = arith.constant 0 : index
    %242 = vector.load %arg1[%c6_194, %c0_195, %c0_196] : memref<15x3x128xf32, #tpu.memory_space<vmem>>, vector<1x3x128xf32>
    %243 = vector.shape_cast %242 : vector<1x3x128xf32> to vector<3x128xf32>
    %244 = vector.broadcast %36 : f32 to vector<3x128xf32>
    %245 = arith.mulf %244, %243 : vector<3x128xf32>
    %246 = arith.addf %241, %245 : vector<3x128xf32>
    %c7_197 = arith.constant 7 : index
    %c0_198 = arith.constant 0 : index
    %c0_199 = arith.constant 0 : index
    %247 = vector.load %arg1[%c7_197, %c0_198, %c0_199] : memref<15x3x128xf32, #tpu.memory_space<vmem>>, vector<1x3x128xf32>
    %248 = vector.shape_cast %247 : vector<1x3x128xf32> to vector<3x128xf32>
    %249 = vector.broadcast %37 : f32 to vector<3x128xf32>
    %250 = arith.mulf %249, %248 : vector<3x128xf32>
    %251 = arith.addf %246, %250 : vector<3x128xf32>
    %c8_200 = arith.constant 8 : index
    %c0_201 = arith.constant 0 : index
    %c0_202 = arith.constant 0 : index
    %252 = vector.load %arg1[%c8_200, %c0_201, %c0_202] : memref<15x3x128xf32, #tpu.memory_space<vmem>>, vector<1x3x128xf32>
    %253 = vector.shape_cast %252 : vector<1x3x128xf32> to vector<3x128xf32>
    %254 = vector.broadcast %38 : f32 to vector<3x128xf32>
    %255 = arith.mulf %254, %253 : vector<3x128xf32>
    %256 = arith.addf %251, %255 : vector<3x128xf32>
    %c9_203 = arith.constant 9 : index
    %c0_204 = arith.constant 0 : index
    %c0_205 = arith.constant 0 : index
    %257 = vector.load %arg1[%c9_203, %c0_204, %c0_205] : memref<15x3x128xf32, #tpu.memory_space<vmem>>, vector<1x3x128xf32>
    %258 = vector.shape_cast %257 : vector<1x3x128xf32> to vector<3x128xf32>
    %259 = vector.broadcast %39 : f32 to vector<3x128xf32>
    %260 = arith.mulf %259, %258 : vector<3x128xf32>
    %261 = arith.addf %256, %260 : vector<3x128xf32>
    %c10_206 = arith.constant 10 : index
    %c0_207 = arith.constant 0 : index
    %c0_208 = arith.constant 0 : index
    %262 = vector.load %arg1[%c10_206, %c0_207, %c0_208] : memref<15x3x128xf32, #tpu.memory_space<vmem>>, vector<1x3x128xf32>
    %263 = vector.shape_cast %262 : vector<1x3x128xf32> to vector<3x128xf32>
    %264 = vector.broadcast %40 : f32 to vector<3x128xf32>
    %265 = arith.mulf %264, %263 : vector<3x128xf32>
    %266 = arith.addf %261, %265 : vector<3x128xf32>
    %c11_209 = arith.constant 11 : index
    %c0_210 = arith.constant 0 : index
    %c0_211 = arith.constant 0 : index
    %267 = vector.load %arg1[%c11_209, %c0_210, %c0_211] : memref<15x3x128xf32, #tpu.memory_space<vmem>>, vector<1x3x128xf32>
    %268 = vector.shape_cast %267 : vector<1x3x128xf32> to vector<3x128xf32>
    %269 = vector.broadcast %41 : f32 to vector<3x128xf32>
    %270 = arith.mulf %269, %268 : vector<3x128xf32>
    %271 = arith.addf %266, %270 : vector<3x128xf32>
    %c12_212 = arith.constant 12 : index
    %c0_213 = arith.constant 0 : index
    %c0_214 = arith.constant 0 : index
    %272 = vector.load %arg1[%c12_212, %c0_213, %c0_214] : memref<15x3x128xf32, #tpu.memory_space<vmem>>, vector<1x3x128xf32>
    %273 = vector.shape_cast %272 : vector<1x3x128xf32> to vector<3x128xf32>
    %274 = vector.broadcast %42 : f32 to vector<3x128xf32>
    %275 = arith.mulf %274, %273 : vector<3x128xf32>
    %276 = arith.addf %271, %275 : vector<3x128xf32>
    %c13_215 = arith.constant 13 : index
    %c0_216 = arith.constant 0 : index
    %c0_217 = arith.constant 0 : index
    %277 = vector.load %arg1[%c13_215, %c0_216, %c0_217] : memref<15x3x128xf32, #tpu.memory_space<vmem>>, vector<1x3x128xf32>
    %278 = vector.shape_cast %277 : vector<1x3x128xf32> to vector<3x128xf32>
    %279 = vector.broadcast %43 : f32 to vector<3x128xf32>
    %280 = arith.mulf %279, %278 : vector<3x128xf32>
    %281 = arith.addf %276, %280 : vector<3x128xf32>
    %c14_218 = arith.constant 14 : index
    %c0_219 = arith.constant 0 : index
    %c0_220 = arith.constant 0 : index
    %282 = vector.load %arg1[%c14_218, %c0_219, %c0_220] : memref<15x3x128xf32, #tpu.memory_space<vmem>>, vector<1x3x128xf32>
    %283 = vector.shape_cast %282 : vector<1x3x128xf32> to vector<3x128xf32>
    %284 = vector.broadcast %44 : f32 to vector<3x128xf32>
    %285 = arith.mulf %284, %283 : vector<3x128xf32>
    %286 = arith.addf %281, %285 : vector<3x128xf32>
    %287 = vector.broadcast %47 : f32 to vector<3x128xf32>
    %288 = arith.addf %286, %287 : vector<3x128xf32>
    %cst_221 = arith.constant 0.000000e+00 : f32
    %289 = vector.broadcast %cst_221 : f32 to vector<3x128xf32>
    %290 = arith.maximumf %288, %289 : vector<3x128xf32>
    %291 = vector.broadcast %50 : f32 to vector<3x128xf32>
    %292 = arith.mulf %291, %290 : vector<3x128xf32>
    %293 = arith.addf %212, %292 : vector<3x128xf32>
    %294 = vector.broadcast %51 : f32 to vector<3x128xf32>
    %295 = arith.addf %293, %294 : vector<3x128xf32>
    %cst_222 = arith.constant 5.000000e-01 : f32
    %296 = vector.broadcast %cst_222 : f32 to vector<3x128xf32>
    %297 = arith.mulf %296, %295 : vector<3x128xf32>
    %298 = math.tanh %297 : vector<3x128xf32>
    %cst_223 = arith.constant 1.000000e+00 : f32
    %299 = vector.broadcast %cst_223 : f32 to vector<3x128xf32>
    %300 = arith.addf %298, %299 : vector<3x128xf32>
    %cst_224 = arith.constant 5.000000e-01 : f32
    %301 = vector.broadcast %cst_224 : f32 to vector<3x128xf32>
    %302 = arith.mulf %301, %300 : vector<3x128xf32>
    %c0_225 = arith.constant 0 : index
    %c0_226 = arith.constant 0 : index
    %303 = vector.load %arg6[%c0_225, %c0_226] : memref<3x128xf32, #tpu.memory_space<vmem>>, vector<3x128xf32>
    tpu.vector_store %arg6[%c0_225, %c0_226], %302 {strides = array<i32>} : memref<3x128xf32, #tpu.memory_space<vmem>>, vector<3x128xf32>,
    return
  }
  func.func @transform_0(%arg0: i32) -> (i32, i32, i32) {
    %c0_i32 = arith.constant 0 : i32
    %c0_i32_0 = arith.constant 0 : i32
    %c0_i32_1 = arith.constant 0 : i32
    return %c0_i32, %arg0, %c0_i32_0 : i32, i32, i32
  }
  func.func @transform_1(%arg0: i32) -> (i32, i32) {
    %c0_i32 = arith.constant 0 : i32
    %c0_i32_0 = arith.constant 0 : i32
    %c0_i32_1 = arith.constant 0 : i32
    return %c0_i32, %c0_i32_0 : i32, i32
  }
  func.func @transform_2(%arg0: i32) -> i32 {
    %c0_i32 = arith.constant 0 : i32
    %c0_i32_0 = arith.constant 0 : i32
    return %c0_i32 : i32
  }
  func.func @transform_3(%arg0: i32) -> (i32, i32) {
    %c0_i32 = arith.constant 0 : i32
    %c0_i32_0 = arith.constant 0 : i32
    %c0_i32_1 = arith.constant 0 : i32
    return %c0_i32, %c0_i32_0 : i32, i32
  }
  func.func @transform_4(%arg0: i32) -> i32 {
    %c0_i32 = arith.constant 0 : i32
    %c0_i32_0 = arith.constant 0 : i32
    return %c0_i32 : i32
  }
  func.func @transform_5(%arg0: i32) -> (i32, i32) {
    %c0_i32 = arith.constant 0 : i32
    %c0_i32_0 = arith.constant 0 : i32
    return %arg0, %c0_i32 : i32, i32
  }
}

</mosaic_0001>

<llo_original>
// kernel: tpu_custom_call.1
$region0: #{tpu_custom_call.1}
  #allocation0 [shape = 'u32[]', space=smem, size = 0x4, offset = 0x4, fixed_abs, tag = 'smem constant byte address 0x4 - core index']
  #allocation1 [shape = 'u32[144,128]{1,0:T(1,128)}', space=vmem, size = 0x12000, scoped, tag = 'internal scratch']
  #allocation2 [shape = 'f32[1]{0:T(128)S(6)}', space=smem, size = 0x200, scoped, tag = 'scoped memory for tpu_custom_call.1']
  %s0 = inlined_call_operand.vmem [shape: f32[15,3,128], index: 0, kind: input, shape index: {}]
  %s1 = inlined_call_operand.vmem [shape: f32[3,15], index: 1, kind: input, shape index: {}]
  %s2 = inlined_call_operand.vmem [shape: f32[3], index: 2, kind: input, shape index: {}]
  %s3 = inlined_call_operand.vmem [shape: f32[1,3], index: 3, kind: input, shape index: {}]
  %s4 = inlined_call_operand.<no memory space> [shape: f32[1], index: 4, kind: input, shape index: {}]
  %s5 = inlined_call_operand.hbm [shape: f32[3,128], index: 5, kind: output, shape index: {}]
  %s6 = sld [smem:[#allocation0]]
  $region42: #{tpu_custom_call.1} parent=0
    _
  %s8 = ssub.s32 1, %s6
  %s9 = scalar_select 0, %s8, %s6
  %10 = sst [smem:[#allocation2]] %s4
  $region1: #{tpu_custom_call.1} parent=0
    #allocation3 [shape = 'u8[2048]{0}', space=smem, size = 0x800, scoped, tag = 'input window, operand 1, single buffered']
    #allocation4 [shape = 's32[1]{0}', space=sflag, size = 0x4, scoped, tag = 'scoped memory for tpu_custom_call.1']
    #allocation5 [shape = 's32[1]{0}', space=sflag, size = 0x4, scoped, tag = 'scoped memory for tpu_custom_call.1']
    #allocation6 [shape = 'u8[512]{0}', space=smem, size = 0x200, scoped, tag = 'input window, operand 2, single buffered']
    #allocation7 [shape = 's32[1]{0}', space=sflag, size = 0x4, scoped, tag = 'scoped memory for tpu_custom_call.1']
    #allocation8 [shape = 'u8[512]{0}', space=smem, size = 0x200, scoped, tag = 'input window, operand 3, single buffered']
    #allocation9 [shape = 'u8[2048]{0}', space=vmem, size = 0x800, scoped, tag = 'output window, operand 0, single buffered']
    %11 = vsyncpa [#allocation5], 0
    %12 = vsyncpa [#allocation7], 0
    %13 = vsyncpa [#allocation4], 0
    // Predicated region
    $region2: #{tpu_custom_call.1} parent=1 // pred_check
      _
    $region3: #{tpu_custom_call.1} parent=1 // pred_check_branch
      %15 = sbr.rel (0) target = $region5
    $region4: #{tpu_custom_call.1} parent=1 // pred_region
      _
    $region5: #{tpu_custom_call.1} parent=1 // pred_fallthru
      _
    // Predicated region
    $region6: #{tpu_custom_call.1} parent=1 // pred_check
      _
    $region7: #{tpu_custom_call.1} parent=1 // pred_check_branch
      %17 = sbr.rel (0) target = $region9
    $region8: #{tpu_custom_call.1} parent=1 // pred_region
      %s19 = ssub.s32 64, 64
      %20 = vsyncadd [#allocation5], %s19
      %s22 = sshll.u32 %s1, 4
      %s23 = int_to_ptr.vmem [resolvable:$true] %s22
      %25 = dma.vmem_to_smem %s23, 64, [#allocation3], [#allocation5]
    $region9: #{tpu_custom_call.1} parent=1 // pred_fallthru
      _
    // Predicated region
    $region10: #{tpu_custom_call.1} parent=1 // pred_check
      _
    $region11: #{tpu_custom_call.1} parent=1 // pred_check_branch
      %27 = sbr.rel (0) target = $region13
    $region12: #{tpu_custom_call.1} parent=1 // pred_region
      %s29 = ssub.s32 16, 16
      %30 = vsyncadd [#allocation7], %s29
      %s32 = sshll.u32 %s2, 4
      %s33 = int_to_ptr.vmem [resolvable:$true] %s32
      %35 = dma.vmem_to_smem %s33, 16, [#allocation6], [#allocation7]
    $region13: #{tpu_custom_call.1} parent=1 // pred_fallthru
      _
    // Predicated region
    $region14: #{tpu_custom_call.1} parent=1 // pred_check
      _
    $region15: #{tpu_custom_call.1} parent=1 // pred_check_branch
      %37 = sbr.rel (0) target = $region17
    $region16: #{tpu_custom_call.1} parent=1 // pred_region
      %s39 = ssub.s32 16, 16
      %40 = vsyncadd [#allocation7], %s39
      %s42 = sshll.u32 %s3, 4
      %s43 = int_to_ptr.vmem [resolvable:$true] %s42
      %45 = dma.vmem_to_smem %s43, 16, [#allocation8], [#allocation7]
    $region17: #{tpu_custom_call.1} parent=1 // pred_fallthru
      _
    // Predicated region
    $region18: #{tpu_custom_call.1} parent=1 // pred_check
      _
    $region19: #{tpu_custom_call.1} parent=1 // pred_check_branch
      %47 = sbr.rel (0) target = $region21
    $region20: #{tpu_custom_call.1} parent=1 // pred_region
      _
    $region21: #{tpu_custom_call.1} parent=1 // pred_fallthru
      _
    // Predicated region
    $region22: #{tpu_custom_call.1} parent=1 // pred_check
      _
    $region23: #{tpu_custom_call.1} parent=1 // pred_check_branch
      %49 = sbr.rel (0) target = $region25
    $region24: #{tpu_custom_call.1} parent=1 // pred_region
      %50 = dma.done [#allocation5], 64
    $region25: #{tpu_custom_call.1} parent=1 // pred_fallthru
      _
    // Predicated region
    $region26: #{tpu_custom_call.1} parent=1 // pred_check
      _
    $region27: #{tpu_custom_call.1} parent=1 // pred_check_branch
      %52 = sbr.rel (0) target = $region29
    $region28: #{tpu_custom_call.1} parent=1 // pred_region
      %53 = dma.done [#allocation7], 16
    $region29: #{tpu_custom_call.1} parent=1 // pred_fallthru
      _
    // Predicated region
    $region30: #{tpu_custom_call.1} parent=1 // pred_check
      _
    $region31: #{tpu_custom_call.1} parent=1 // pred_check_branch
      %55 = sbr.rel (0) target = $region33
    $region32: #{tpu_custom_call.1} parent=1 // pred_region
      %56 = dma.done [#allocation7], 16
    $region33: #{tpu_custom_call.1} parent=1 // pred_fallthru
      _
    %57 = sfence
    %s58 = sld [smem:[#allocation3]]
    %s59 = sld [smem:[#allocation3 + $0x1]]
    %s60 = sld [smem:[#allocation3 + $0x2]]
    %s61 = sld [smem:[#allocation3 + $0x3]]
    %s62 = sld [smem:[#allocation3 + $0x4]]
    %s63 = sld [smem:[#allocation3 + $0x5]]
    %s64 = sld [smem:[#allocation3 + $0x6]]
    %s65 = sld [smem:[#allocation3 + $0x7]]
    %s66 = sld [smem:[#allocation3 + $0x8]]
    %s67 = sld [smem:[#allocation3 + $0x9]]
    %s68 = sld [smem:[#allocation3 + $0xa]]
    %s69 = sld [smem:[#allocation3 + $0xb]]
    %s70 = sld [smem:[#allocation3 + $0xc]]
    %s71 = sld [smem:[#allocation3 + $0xd]]
    %s72 = sld [smem:[#allocation3 + $0xe]]
    %s73 = sld [smem:[#allocation3 + $0x80]]
    %s74 = sld [smem:[#allocation3 + $0x81]]
    %s75 = sld [smem:[#allocation3 + $0x82]]
    %s76 = sld [smem:[#allocation3 + $0x83]]
    %s77 = sld [smem:[#allocation3 + $0x84]]
    %s78 = sld [smem:[#allocation3 + $0x85]]
    %s79 = sld [smem:[#allocation3 + $0x86]]
    %s80 = sld [smem:[#allocation3 + $0x87]]
    %s81 = sld [smem:[#allocation3 + $0x88]]
    %s82 = sld [smem:[#allocation3 + $0x89]]
    %s83 = sld [smem:[#allocation3 + $0x8a]]
    %s84 = sld [smem:[#allocation3 + $0x8b]]
    %s85 = sld [smem:[#allocation3 + $0x8c]]
    %s86 = sld [smem:[#allocation3 + $0x8d]]
    %s87 = sld [smem:[#allocation3 + $0x8e]]
    %s88 = sld [smem:[#allocation3 + $0x100]]
    %s89 = sld [smem:[#allocation3 + $0x101]]
    %s90 = sld [smem:[#allocation3 + $0x102]]
    %s91 = sld [smem:[#allocation3 + $0x103]]
    %s92 = sld [smem:[#allocation3 + $0x104]]
    %s93 = sld [smem:[#allocation3 + $0x105]]
    %s94 = sld [smem:[#allocation3 + $0x106]]
    %s95 = sld [smem:[#allocation3 + $0x107]]
    %s96 = sld [smem:[#allocation3 + $0x108]]
    %s97 = sld [smem:[#allocation3 + $0x109]]
    %s98 = sld [smem:[#allocation3 + $0x10a]]
    %s99 = sld [smem:[#allocation3 + $0x10b]]
    %s100 = sld [smem:[#allocation3 + $0x10c]]
    %s101 = sld [smem:[#allocation3 + $0x10d]]
    %s102 = sld [smem:[#allocation3 + $0x10e]]
    %s103 = sld [smem:[#allocation6]]
    %s104 = sld [smem:[#allocation6 + $0x1]]
    %s105 = sld [smem:[#allocation6 + $0x2]]
    %s106 = sld [smem:[#allocation8]]
    %s107 = sld [smem:[#allocation8 + $0x1]]
    %s108 = sld [smem:[#allocation8 + $0x2]]
    %s109 = sld [smem:[#allocation2]]
    %v110 = vld [vmem:[%s0] sm:$0x7]
    %v111 = vstv %s58
    %v112 = vmul.f32 %v111, %v110
    %s113 = scalar_lea.vmem %s0, 4
    %v114 = vld [vmem:[%s113] sm:$0x7]
    %v115 = vstv %s59
    %v116 = vmul.f32 %v115, %v114
    %v117 = vadd.f32 %v112, %v116
    %s118 = scalar_lea.vmem %s0, 8
    %v119 = vld [vmem:[%s118] sm:$0x7]
    %v120 = vstv %s60
    %v121 = vmul.f32 %v120, %v119
    %v122 = vadd.f32 %v117, %v121
    %s123 = scalar_lea.vmem %s0, 12
    %v124 = vld [vmem:[%s123] sm:$0x7]
    %v125 = vstv %s61
    %v126 = vmul.f32 %v125, %v124
    %v127 = vadd.f32 %v122, %v126
    %s128 = scalar_lea.vmem %s0, 16
    %v129 = vld [vmem:[%s128] sm:$0x7]
    %v130 = vstv %s62
    %v131 = vmul.f32 %v130, %v129
    %v132 = vadd.f32 %v127, %v131
    %s133 = scalar_lea.vmem %s0, 20
    %v134 = vld [vmem:[%s133] sm:$0x7]
    %v135 = vstv %s63
    %v136 = vmul.f32 %v135, %v134
    %v137 = vadd.f32 %v132, %v136
    %s138 = scalar_lea.vmem %s0, 24
    %v139 = vld [vmem:[%s138] sm:$0x7]
    %v140 = vstv %s64
    %v141 = vmul.f32 %v140, %v139
    %v142 = vadd.f32 %v137, %v141
    %s143 = scalar_lea.vmem %s0, 28
    %v144 = vld [vmem:[%s143] sm:$0x7]
    %v145 = vstv %s65
    %v146 = vmul.f32 %v145, %v144
    %v147 = vadd.f32 %v142, %v146
    %s148 = scalar_lea.vmem %s0, 32
    %v149 = vld [vmem:[%s148] sm:$0x7]
    %v150 = vstv %s66
    %v151 = vmul.f32 %v150, %v149
    %v152 = vadd.f32 %v147, %v151
    %s153 = scalar_lea.vmem %s0, 36
    %v154 = vld [vmem:[%s153] sm:$0x7]
    %v155 = vstv %s67
    %v156 = vmul.f32 %v155, %v154
    %v157 = vadd.f32 %v152, %v156
    %s158 = scalar_lea.vmem %s0, 40
    %v159 = vld [vmem:[%s158] sm:$0x7]
    %v160 = vstv %s68
    %v161 = vmul.f32 %v160, %v159
    %v162 = vadd.f32 %v157, %v161
    %s163 = scalar_lea.vmem %s0, 44
    %v164 = vld [vmem:[%s163] sm:$0x7]
    %v165 = vstv %s69
    %v166 = vmul.f32 %v165, %v164
    %v167 = vadd.f32 %v162, %v166
    %s168 = scalar_lea.vmem %s0, 48
    %v169 = vld [vmem:[%s168] sm:$0x7]
    %v170 = vstv %s70
    %v171 = vmul.f32 %v170, %v169
    %v172 = vadd.f32 %v167, %v171
    %s173 = scalar_lea.vmem %s0, 52
    %v174 = vld [vmem:[%s173] sm:$0x7]
    %v175 = vstv %s71
    %v176 = vmul.f32 %v175, %v174
    %v177 = vadd.f32 %v172, %v176
    %s178 = scalar_lea.vmem %s0, 56
    %v179 = vld [vmem:[%s178] sm:$0x7]
    %v180 = vstv %s72
    %v181 = vmul.f32 %v180, %v179
    %v182 = vadd.f32 %v177, %v181
    %v183 = vstv %s103
    %v184 = vadd.f32 %v182, %v183
    %v185 = vmax.f32 %v184, 0.0
    %v186 = vstv %s106
    %v187 = vmul.f32 %v186, %v185
    %v188 = vstv %s73
    %v189 = vmul.f32 %v188, %v110
    %v190 = vstv %s74
    %v191 = vmul.f32 %v190, %v114
    %v192 = vadd.f32 %v189, %v191
    %v193 = vstv %s75
    %v194 = vmul.f32 %v193, %v119
    %v195 = vadd.f32 %v192, %v194
    %v196 = vstv %s76
    %v197 = vmul.f32 %v196, %v124
    %v198 = vadd.f32 %v195, %v197
    %v199 = vstv %s77
    %v200 = vmul.f32 %v199, %v129
    %v201 = vadd.f32 %v198, %v200
    %v202 = vstv %s78
    %v203 = vmul.f32 %v202, %v134
    %v204 = vadd.f32 %v201, %v203
    %v205 = vstv %s79
    %v206 = vmul.f32 %v205, %v139
    %v207 = vadd.f32 %v204, %v206
    %v208 = vstv %s80
    %v209 = vmul.f32 %v208, %v144
    %v210 = vadd.f32 %v207, %v209
    %v211 = vstv %s81
    %v212 = vmul.f32 %v211, %v149
    %v213 = vadd.f32 %v210, %v212
    %v214 = vstv %s82
    %v215 = vmul.f32 %v214, %v154
    %v216 = vadd.f32 %v213, %v215
    %v217 = vstv %s83
    %v218 = vmul.f32 %v217, %v159
    %v219 = vadd.f32 %v216, %v218
    %v220 = vstv %s84
    %v221 = vmul.f32 %v220, %v164
    %v222 = vadd.f32 %v219, %v221
    %v223 = vstv %s85
    %v224 = vmul.f32 %v223, %v169
    %v225 = vadd.f32 %v222, %v224
    %v226 = vstv %s86
    %v227 = vmul.f32 %v226, %v174
    %v228 = vadd.f32 %v225, %v227
    %v229 = vstv %s87
    %v230 = vmul.f32 %v229, %v179
    %v231 = vadd.f32 %v228, %v230
    %v232 = vstv %s104
    %v233 = vadd.f32 %v231, %v232
    %v234 = vmax.f32 %v233, 0.0
    %v235 = vstv %s107
    %v236 = vmul.f32 %v235, %v234
    %v237 = vadd.f32 %v187, %v236
    %v238 = vstv %s88
    %v239 = vmul.f32 %v238, %v110
    %v240 = vstv %s89
    %v241 = vmul.f32 %v240, %v114
    %v242 = vadd.f32 %v239, %v241
    %v243 = vstv %s90
    %v244 = vmul.f32 %v243, %v119
    %v245 = vadd.f32 %v242, %v244
    %v246 = vstv %s91
    %v247 = vmul.f32 %v246, %v124
    %v248 = vadd.f32 %v245, %v247
    %v249 = vstv %s92
    %v250 = vmul.f32 %v249, %v129
    %v251 = vadd.f32 %v248, %v250
    %v252 = vstv %s93
    %v253 = vmul.f32 %v252, %v134
    %v254 = vadd.f32 %v251, %v253
    %v255 = vstv %s94
    %v256 = vmul.f32 %v255, %v139
    %v257 = vadd.f32 %v254, %v256
    %v258 = vstv %s95
    %v259 = vmul.f32 %v258, %v144
    %v260 = vadd.f32 %v257, %v259
    %v261 = vstv %s96
    %v262 = vmul.f32 %v261, %v149
    %v263 = vadd.f32 %v260, %v262
    %v264 = vstv %s97
    %v265 = vmul.f32 %v264, %v154
    %v266 = vadd.f32 %v263, %v265
    %v267 = vstv %s98
    %v268 = vmul.f32 %v267, %v159
    %v269 = vadd.f32 %v266, %v268
    %v270 = vstv %s99
    %v271 = vmul.f32 %v270, %v164
    %v272 = vadd.f32 %v269, %v271
    %v273 = vstv %s100
    %v274 = vmul.f32 %v273, %v169
    %v275 = vadd.f32 %v272, %v274
    %v276 = vstv %s101
    %v277 = vmul.f32 %v276, %v174
    %v278 = vadd.f32 %v275, %v277
    %v279 = vstv %s102
    %v280 = vmul.f32 %v279, %v179
    %v281 = vadd.f32 %v278, %v280
    %v282 = vstv %s105
    %v283 = vadd.f32 %v281, %v282
    %v284 = vmax.f32 %v283, 0.0
    %v285 = vstv %s108
    %v286 = vmul.f32 %v285, %v284
    %v287 = vadd.f32 %v237, %v286
    %v288 = vstv %s109
    %v289 = vadd.f32 %v287, %v288
    %v290 = vmul.f32 %v289, 0.5
    %v291 = vtanh.pop %v290
    %v292 = vadd.f32 %v291, 1.0
    %v293 = vmul.f32 %v292, 0.5
    %294 = vst [vmem:[#allocation9] sm:$0x7] %v293
    // Predicated region
    $region34: #{tpu_custom_call.1} parent=1 // pred_check
      _
    $region35: #{tpu_custom_call.1} parent=1 // pred_check_branch
      %296 = sbr.rel (0) target = $region37
    $region36: #{tpu_custom_call.1} parent=1 // pred_region
      %s298 = ssub.s32 64, 64
      %299 = vsyncadd [#allocation4], %s298
      %s301 = sshll.u32 [#allocation9], 4
      %s302 = int_to_ptr.vmem [resolvable:$true] %s301
      %304 = dma.vmem_to_hbm [thread:$0]  %s302, 64, %s5, [#allocation4]
    $region37: #{tpu_custom_call.1} parent=1 // pred_fallthru
      _
    // Predicated region
    $region38: #{tpu_custom_call.1} parent=1 // pred_check
      _
    $region39: #{tpu_custom_call.1} parent=1 // pred_check_branch
      %306 = sbr.rel (0) target = $region41
    $region40: #{tpu_custom_call.1} parent=1 // pred_region
      %307 = dma.done [#allocation4], 64
    $region41: #{tpu_custom_call.1} parent=1 // pred_fallthru
      _
    %308 = vsyncpa [#allocation4], 1
    %309 = vsyncpa [#allocation5], 1
    %310 = vsyncpa [#allocation7], 1

</llo_original>
